<compile_context>
chip_gen: v7x
topology: tpu7x:2x2x1
jax: 0.10.0
libtpu: 0.0.40
codegen_flags: <defaults>
</compile_context>

<pallas_src>
import jax
import jax.numpy as jnp
from jax.experimental import pallas as pl
from jax.experimental.pallas import tpu as pltpu


D_PAD = 128  # lane width: hidden feature dims are padded to this


def _round_up(x, m):
    return (x + m - 1) // m * m


def fnn_kernel(*refs):
    """refs = (x_ref, w0, b0, w1, b1, ..., w_{L-1}, b_{L-1}, out_ref).

    x_ref is f32 at its true width (tb, d_in); weights are in the compute
    dtype (bf16 by default); biases and the output are f32.  All matmuls
    accumulate in f32 on the MXU; bias-add + tanh are f32 elementwise.
    """
    x_ref = refs[0]
    out_ref = refs[-1]
    params = refs[1:-1]
    n_layers = len(params) // 2
    compute_dtype = params[0].dtype

    y = x_ref[...].astype(compute_dtype)          # in-kernel cast (no extra XLA op)
    for i in range(n_layers):
        w = params[2 * i][...]
        b = params[2 * i + 1][...]
        # Linear: MXU matmul with f32 accumulation, f32 bias add.
        acc = jnp.dot(y, w, preferred_element_type=jnp.float32) + b
        if i < n_layers - 1:
            acc = jnp.tanh(acc)                   # f32 EUP work
            y = acc.astype(compute_dtype)         # back to compute dtype for next MXU pass
        else:
            y = acc                               # final layer stays f32, true d_out width
    out_ref[...] = y.astype(out_ref.dtype)


def prepare_params(weights, biases, *, d_pad=D_PAD, compute_dtype=jnp.bfloat16):
    """Pad only the HIDDEN dims to `d_pad` (done once, not per call).

    First layer keeps its true input width d_in; last layer keeps its true
    output width d_out.  Weights are stored (d_in, d_out) -- transpose of
    nn.Linear -- and cast to the MXU compute dtype.  Biases stay f32.
    """
    n_layers = len(weights)
    pw, pb = [], []
    for i, (w, b) in enumerate(zip(weights, biases)):
        d_in, d_out = w.shape
        assert d_in <= d_pad and d_out <= d_pad, "layer widths > 128 not supported"
        in_dim = d_in if i == 0 else d_pad
        out_dim = d_out if i == n_layers - 1 else d_pad
        wp = jnp.zeros((in_dim, out_dim), dtype=compute_dtype)
        wp = wp.at[:d_in, :d_out].set(w.astype(compute_dtype))
        bp = jnp.zeros((1, out_dim), dtype=jnp.float32)
        bp = bp.at[:, :d_out].set(b.reshape(1, -1).astype(jnp.float32))
        pw.append(wp)
        pb.append(bp)
    return pw, pb


def fnn_forward(x, padded_weights, padded_biases, *, tile_b=1024):
    """Fused MLP forward pass as one pallas_call with a batch-axis grid.

    x:               [B, d_in] f32 (true width, never lane-padded here)
    padded_weights:  list of weights from prepare_params (compute dtype)
    padded_biases:   list of (1, width) f32 biases from prepare_params
    returns:         [B, d_out] f32
    """
    assert len(padded_weights) == len(padded_biases)
    B, d_in = x.shape
    assert padded_weights[0].shape[0] == d_in
    d_out = padded_weights[-1].shape[1]

    # Batch tiling: tiles as big as the cap allows, but keep >= 2 grid steps
    # whenever the batch permits so "parallel" shards across both v7x TCs.
    b8 = _round_up(B, 8)
    if b8 >= 16:
        tb = min(_round_up(tile_b, 8), _round_up((b8 + 1) // 2, 8))
    else:
        tb = b8
    b_pad = _round_up(b8, tb)
    if b_pad != B:
        # Only pads the narrow (d_in-wide) input; negligible bytes.
        x = jnp.pad(x, ((0, b_pad - B), (0, 0)))
    grid = (b_pad // tb,)

    # x: tiled over batch at TRUE feature width (full-extent last dim is legal).
    in_specs = [pl.BlockSpec((tb, d_in), lambda i: (i, 0))]
    flat_params = []
    for w, b in zip(padded_weights, padded_biases):
        flat_params += [w, b]
        # Constant block index -> weights/biases stay resident in VMEM.
        in_specs.append(pl.BlockSpec(w.shape, lambda i: (0, 0)))
        in_specs.append(pl.BlockSpec(b.shape, lambda i: (0, 0)))
    # Narrow output: only the real d_out columns are ever produced/written.
    out_spec = pl.BlockSpec((tb, d_out), lambda i: (i, 0))

    # Honest cost estimate (true/narrow sizes).
    flops = 2 * b_pad * sum(w.shape[0] * w.shape[1] for w in padded_weights)
    transcendentals = b_pad * sum(w.shape[1] for w in padded_weights[:-1])
    bytes_accessed = (
        x.size * x.dtype.itemsize
        + sum(w.size * w.dtype.itemsize for w in padded_weights)
        + sum(b.size * b.dtype.itemsize for b in padded_biases)
        + b_pad * d_out * 4
    )
    cost = pl.CostEstimate(flops=flops,
                           transcendentals=transcendentals,
                           bytes_accessed=bytes_accessed)

    out = pl.pallas_call(
        fnn_kernel,
        out_shape=jax.ShapeDtypeStruct((b_pad, d_out), jnp.float32),
        grid=grid,
        in_specs=in_specs,
        out_specs=out_spec,
        compiler_params=pltpu.CompilerParams(
            dimension_semantics=("parallel",)),   # shards batch across TCs (v7x)
        cost_estimate=cost,
    )(x, *flat_params)

    if b_pad != B:
        out = out[:B]
    return out


def init_params(key, layer_size):
    """Glorot-normal weights (as in `_init_weights`), zero biases.

    Weights are created in (d_in, d_out) layout (transpose of nn.Linear).
    """
    weights, biases = [], []
    for i in range(len(layer_size) - 1):
        fan_in, fan_out = layer_size[i], layer_size[i + 1]
        key, sub = jax.random.split(key)
        std = (2.0 / (fan_in + fan_out)) ** 0.5
        w = std * jax.random.normal(sub, (fan_in, fan_out), dtype=jnp.float32)
        b = jnp.zeros((1, fan_out), dtype=jnp.float32)
        weights.append(w)
        biases.append(b)
    return weights, biases


def fnn_reference(x, weights, biases):
    """Plain-JAX f32 reference of the same forward pass (for verification)."""
    y = x
    n_layers = len(weights)
    for i, (w, b) in enumerate(zip(weights, biases)):
        y = y @ w + b
        if i < n_layers - 1:
            y = jnp.tanh(y)
    return y


if __name__ == "__main__":
    # fnn(layer_size=[4, 32, 32, 2], activation='tanh',
    #     kernel_initializer='Glorot normal', dropout_rate=0.0, use_bias=True)
    layer_size = [4, 32, 32, 2]
    B = 256          # small demo batch; grid of 2 -> pipelined + megacore-parallel

    key = jax.random.PRNGKey(0)
    key, xkey = jax.random.split(key)
    x = jax.random.normal(xkey, (B, layer_size[0]), dtype=jnp.float32)
    weights, biases = init_params(key, layer_size)
    ref = fnn_reference(x, weights, biases)

    # --- default path: bf16 weights / x-tile, f32 accumulation (all TPU gens) ---
    pw16, pb16 = prepare_params(weights, biases, compute_dtype=jnp.bfloat16)
    out_bf16 = fnn_forward(x, pw16, pb16)
    out_bf16 = jax.block_until_ready(out_bf16)
    assert out_bf16.shape == (B, layer_size[-1])
    assert jnp.allclose(out_bf16, ref, atol=5e-2, rtol=5e-2), "bf16 Pallas mismatch"

    # --- f32 matmul path (bit-faithful to the PyTorch forward) ---
    pw32, pb32 = prepare_params(weights, biases, compute_dtype=jnp.float32)
    out_f32 = fnn_forward(x, pw32, pb32)
    out_f32 = jax.block_until_ready(out_f32)
    assert out_f32.shape == (B, layer_size[-1])
    assert jnp.allclose(out_f32, ref, atol=1e-5, rtol=1e-5), "f32 Pallas mismatch"

    print("KERNEL_OK")
</pallas_src>

<mosaic_0001>
module attributes {stable_mosaic.version = 11 : i64} {
  func.func @fnn_kernel(%arg0: i32, %arg1: memref<128x4xf32, #tpu.memory_space<vmem>>, %arg2: memref<4x128xbf16, #tpu.memory_space<vmem>>, %arg3: memref<1x128xf32, #tpu.memory_space<vmem>>, %arg4: memref<128x128xbf16, #tpu.memory_space<vmem>>, %arg5: memref<1x128xf32, #tpu.memory_space<vmem>>, %arg6: memref<128x2xbf16, #tpu.memory_space<vmem>>, %arg7: memref<1x2xf32, #tpu.memory_space<vmem>>, %arg8: memref<128x2xf32, #tpu.memory_space<vmem>>) attributes {dimension_semantics = [#tpu.dimension_semantics<parallel>], iteration_bounds = array<i64: 2>, scalar_prefetch = 0 : i64, scratch_operands = 0 : i64, tpu.core_type = #tpu.core_type<tc>, window_params = [{transform_indices = @transform_0, window_bounds = array<i64: 128, 4>}, {pipeline_mode = #tpu.pipeline_mode<synchronous>, transform_indices = @transform_1, window_bounds = array<i64: 4, 128>}, {pipeline_mode = #tpu.pipeline_mode<synchronous>, transform_indices = @transform_2, window_bounds = array<i64: 1, 128>}, {pipeline_mode = #tpu.pipeline_mode<synchronous>, transform_indices = @transform_3, window_bounds = array<i64: 128, 128>}, {pipeline_mode = #tpu.pipeline_mode<synchronous>, transform_indices = @transform_4, window_bounds = array<i64: 1, 128>}, {pipeline_mode = #tpu.pipeline_mode<synchronous>, transform_indices = @transform_5, window_bounds = array<i64: 128, 2>}, {pipeline_mode = #tpu.pipeline_mode<synchronous>, transform_indices = @transform_6, window_bounds = array<i64: 1, 2>}, {transform_indices = @transform_7, window_bounds = array<i64: 128, 2>}]} {
    %c0 = arith.constant 0 : index
    %c0_0 = arith.constant 0 : index
    %0 = vector.load %arg1[%c0, %c0_0] : memref<128x4xf32, #tpu.memory_space<vmem>>, vector<128x4xf32>
    %1 = arith.truncf %0 : vector<128x4xf32> to vector<128x4xbf16>
    %c0_1 = arith.constant 0 : index
    %c0_2 = arith.constant 0 : index
    %2 = vector.load %arg2[%c0_1, %c0_2] : memref<4x128xbf16, #tpu.memory_space<vmem>>, vector<4x128xbf16>
    %c0_3 = arith.constant 0 : index
    %c0_4 = arith.constant 0 : index
    %3 = vector.load %arg3[%c0_3, %c0_4] : memref<1x128xf32, #tpu.memory_space<vmem>>, vector<1x128xf32>
    %cst = arith.constant dense<0.000000e+00> : vector<128x128xf32>
    %4 = tpu.matmul %1, %2, %cst {dimension_numbers = #tpu.dot_dimension_numbers<[1], [0], [0], [1], [0, 0, 1, 1], [], []>} : vector<128x4xbf16>, vector<4x128xbf16>, vector<128x128xf32> -> vector<128x128xf32>
    %5 = vector.broadcast %3 : vector<1x128xf32> to vector<128x128xf32>
    %6 = arith.addf %4, %5 : vector<128x128xf32>
    %7 = math.tanh %6 : vector<128x128xf32>
    %8 = arith.truncf %7 : vector<128x128xf32> to vector<128x128xbf16>
    %c0_5 = arith.constant 0 : index
    %c0_6 = arith.constant 0 : index
    %9 = vector.load %arg4[%c0_5, %c0_6] : memref<128x128xbf16, #tpu.memory_space<vmem>>, vector<128x128xbf16>
    %c0_7 = arith.constant 0 : index
    %c0_8 = arith.constant 0 : index
    %10 = vector.load %arg5[%c0_7, %c0_8] : memref<1x128xf32, #tpu.memory_space<vmem>>, vector<1x128xf32>
    %cst_9 = arith.constant dense<0.000000e+00> : vector<128x128xf32>
    %11 = tpu.matmul %8, %9, %cst_9 {dimension_numbers = #tpu.dot_dimension_numbers<[1], [0], [0], [1], [0, 0, 1, 1], [], []>} : vector<128x128xbf16>, vector<128x128xbf16>, vector<128x128xf32> -> vector<128x128xf32>
    %12 = vector.broadcast %10 : vector<1x128xf32> to vector<128x128xf32>
    %13 = arith.addf %11, %12 : vector<128x128xf32>
    %14 = math.tanh %13 : vector<128x128xf32>
    %15 = arith.truncf %14 : vector<128x128xf32> to vector<128x128xbf16>
    %c0_10 = arith.constant 0 : index
    %c0_11 = arith.constant 0 : index
    %16 = vector.load %arg6[%c0_10, %c0_11] : memref<128x2xbf16, #tpu.memory_space<vmem>>, vector<128x2xbf16>
    %c0_12 = arith.constant 0 : index
    %c0_13 = arith.constant 0 : index
    %17 = vector.load %arg7[%c0_12, %c0_13] : memref<1x2xf32, #tpu.memory_space<vmem>>, vector<1x2xf32>
    %cst_14 = arith.constant dense<0.000000e+00> : vector<128x2xf32>
    %18 = tpu.matmul %15, %16, %cst_14 {dimension_numbers = #tpu.dot_dimension_numbers<[1], [0], [0], [1], [0, 0, 1, 1], [], []>} : vector<128x128xbf16>, vector<128x2xbf16>, vector<128x2xf32> -> vector<128x2xf32>
    %19 = vector.broadcast %17 : vector<1x2xf32> to vector<128x2xf32>
    %20 = arith.addf %18, %19 : vector<128x2xf32>
    %c0_15 = arith.constant 0 : index
    %c0_16 = arith.constant 0 : index
    %21 = vector.load %arg8[%c0_15, %c0_16] : memref<128x2xf32, #tpu.memory_space<vmem>>, vector<128x2xf32>
    tpu.vector_store %arg8[%c0_15, %c0_16], %20 {strides = array<i32>} : memref<128x2xf32, #tpu.memory_space<vmem>>, vector<128x2xf32>,
    return
  }
  func.func @transform_0(%arg0: i32) -> (i32, i32) {
    %c0_i32 = arith.constant 0 : i32
    %c0_i32_0 = arith.constant 0 : i32
    return %arg0, %c0_i32 : i32, i32
  }
  func.func @transform_1(%arg0: i32) -> (i32, i32) {
    %c0_i32 = arith.constant 0 : i32
    %c0_i32_0 = arith.constant 0 : i32
    %c0_i32_1 = arith.constant 0 : i32
    return %c0_i32, %c0_i32_0 : i32, i32
  }
  func.func @transform_2(%arg0: i32) -> (i32, i32) {
    %c0_i32 = arith.constant 0 : i32
    %c0_i32_0 = arith.constant 0 : i32
    %c0_i32_1 = arith.constant 0 : i32
    return %c0_i32, %c0_i32_0 : i32, i32
  }
  func.func @transform_3(%arg0: i32) -> (i32, i32) {
    %c0_i32 = arith.constant 0 : i32
    %c0_i32_0 = arith.constant 0 : i32
    %c0_i32_1 = arith.constant 0 : i32
    return %c0_i32, %c0_i32_0 : i32, i32
  }
  func.func @transform_4(%arg0: i32) -> (i32, i32) {
    %c0_i32 = arith.constant 0 : i32
    %c0_i32_0 = arith.constant 0 : i32
    %c0_i32_1 = arith.constant 0 : i32
    return %c0_i32, %c0_i32_0 : i32, i32
  }
  func.func @transform_5(%arg0: i32) -> (i32, i32) {
    %c0_i32 = arith.constant 0 : i32
    %c0_i32_0 = arith.constant 0 : i32
    %c0_i32_1 = arith.constant 0 : i32
    return %c0_i32, %c0_i32_0 : i32, i32
  }
  func.func @transform_6(%arg0: i32) -> (i32, i32) {
    %c0_i32 = arith.constant 0 : i32
    %c0_i32_0 = arith.constant 0 : i32
    %c0_i32_1 = arith.constant 0 : i32
    return %c0_i32, %c0_i32_0 : i32, i32
  }
  func.func @transform_7(%arg0: i32) -> (i32, i32) {
    %c0_i32 = arith.constant 0 : i32
    %c0_i32_0 = arith.constant 0 : i32
    return %arg0, %c0_i32 : i32, i32
  }
}

</mosaic_0001>

<llo_original>
// kernel: tpu_custom_call.1
$region0: #{tpu_custom_call.1}
  #allocation0 [shape = 'u32[]', space=smem, size = 0x4, offset = 0x4, fixed_abs, tag = 'smem constant byte address 0x4 - core index']
  #allocation1 [shape = 'u32[144,128]{1,0:T(1,128)}', space=vmem, size = 0x12000, scoped, tag = 'internal scratch']
  %s0 = inlined_call_operand.vmem [shape: f32[256,4], index: 0, kind: input, shape index: {}]
  %s1 = inlined_call_operand.vmem [shape: bf16[4,128], index: 1, kind: input, shape index: {}]
  %s2 = inlined_call_operand.vmem [shape: f32[1,128], index: 2, kind: input, shape index: {}]
  %s3 = inlined_call_operand.vmem [shape: bf16[128,128], index: 3, kind: input, shape index: {}]
  %s4 = inlined_call_operand.vmem [shape: f32[1,128], index: 4, kind: input, shape index: {}]
  %s5 = inlined_call_operand.vmem [shape: bf16[128,2], index: 5, kind: input, shape index: {}]
  %s6 = inlined_call_operand.vmem [shape: f32[1,2], index: 6, kind: input, shape index: {}]
  %s7 = inlined_call_operand.vmem [shape: f32[256,2], index: 7, kind: output, shape index: {}]
  %s8 = sld [smem:[#allocation0]]
  $region61: #{tpu_custom_call.1} parent=0
    _
  %s10 = ssub.s32 1, %s8
  %s11 = scalar_select 0, %s10, %s8
  loop: start=0, step=1, limit=4
  $region2: #{tpu_custom_call.1} parent=0 // loop_pre_header
    _
  $region3: #{tpu_custom_call.1} parent=0 // loop_header
    %s13 = sphi 0, %s17
    %p14 = scmp.ge.s32.totalorder %s13, 4
    %s23 = sphi 0, %s25
    %s26 = sphi 0, %s23
    %s27 = sphi 0, %s26
    %s43 = sphi 0, %s27
    %s47 = sphi 0, %s47
    %s49 = sphi 0, %s47
    %s50 = sphi 0, %s49
    %s64 = sphi 0, %s50
    %s68 = sphi 0, %s68
    %s70 = sphi 0, %s68
    %s71 = sphi 0, %s70
    %s85 = sphi 0, %s71
    %s89 = sphi 0, %s89
    %s91 = sphi 0, %s89
    %s92 = sphi 0, %s91
    %s106 = sphi 0, %s92
    %s110 = sphi 0, %s110
    %s112 = sphi 0, %s110
    %s113 = sphi 0, %s112
    %s127 = sphi 0, %s113
    %s131 = sphi 0, %s131
    %s133 = sphi 0, %s131
    %s134 = sphi 0, %s133
    %s148 = sphi 0, %s134
    %s152 = sphi 0, %s152
    %s154 = sphi 0, %s152
    %s155 = sphi 0, %s154
    %s169 = sphi 0, %s155
    %s175 = sphi 0, %s177
    %s178 = sphi 0, %s175
    %s179 = sphi 0, %s178
    %s195 = sphi 0, %s179
  $region4: #{tpu_custom_call.1} parent=0 // loop_header_branch
    %16 = sbr.rel (%p14) target = $region8
  $region5: #{tpu_custom_call.1} parent=0 // loop_body
    %s18 = ssub.s32 %s13, 1
    %s19 = ssub.s32 %s13, 2
    %s20 = sadd.s32 %s13, 1
    %s21 = ssub.s32 %s13, %s20
    %p22 = scmp.eq.s32.totalorder %s21, 0
    %s24 = sadd.s32 %s23, 1
    %s25 = scalar_select %p22, %s23, %s24
    %p28 = pneg %p22
    %p29 = scmp.eq.s32.totalorder %s13, 1
    %p30 = por %p28, %p29
    %p31 = scmp.ne.s32.totalorder %s23, %s26
    %p32 = scmp.eq.s32.totalorder %s13, 0
    %p33 = por %p31, %p32
    %p34 = scmp.ne.s32.totalorder %s23, %s26
    %p35 = scmp.eq.s32.totalorder %s18, 1
    %p36 = por %p34, %p35
    %p37 = scmp.ne.s32.totalorder %s26, %s27
    %p38 = scmp.eq.s32.totalorder %s18, 0
    %p39 = por %p37, %p38
    %p40 = scmp.ne.s32.totalorder %s26, %s27
    %p41 = scmp.eq.s32.totalorder %s19, 1
    %p42 = por %p40, %p41
    %p44 = scmp.ne.s32.totalorder %s27, %s43
    %p45 = scmp.eq.s32.totalorder %s19, 0
    %p46 = por %p44, %p45
    %s48 = sadd.s32 %s47, 1
    %p51 = scmp.eq.s32.totalorder %s13, 1
    %p52 = scmp.ne.s32.totalorder %s47, %s49
    %p53 = scmp.eq.s32.totalorder %s13, 0
    %p54 = por %p52, %p53
    %p55 = scmp.ne.s32.totalorder %s47, %s49
    %p56 = scmp.eq.s32.totalorder %s18, 1
    %p57 = por %p55, %p56
    %p58 = scmp.ne.s32.totalorder %s49, %s50
    %p59 = scmp.eq.s32.totalorder %s18, 0
    %p60 = por %p58, %p59
    %p61 = scmp.ne.s32.totalorder %s49, %s50
    %p62 = scmp.eq.s32.totalorder %s19, 1
    %p63 = por %p61, %p62
    %p65 = scmp.ne.s32.totalorder %s50, %s64
    %p66 = scmp.eq.s32.totalorder %s19, 0
    %p67 = por %p65, %p66
    %s69 = sadd.s32 %s68, 1
    %p72 = scmp.eq.s32.totalorder %s13, 1
    %p73 = scmp.ne.s32.totalorder %s68, %s70
    %p74 = scmp.eq.s32.totalorder %s13, 0
    %p75 = por %p73, %p74
    %p76 = scmp.ne.s32.totalorder %s68, %s70
    %p77 = scmp.eq.s32.totalorder %s18, 1
    %p78 = por %p76, %p77
    %p79 = scmp.ne.s32.totalorder %s70, %s71
    %p80 = scmp.eq.s32.totalorder %s18, 0
    %p81 = por %p79, %p80
    %p82 = scmp.ne.s32.totalorder %s70, %s71
    %p83 = scmp.eq.s32.totalorder %s19, 1
    %p84 = por %p82, %p83
    %p86 = scmp.ne.s32.totalorder %s71, %s85
    %p87 = scmp.eq.s32.totalorder %s19, 0
    %p88 = por %p86, %p87
    %s90 = sadd.s32 %s89, 1
    %p93 = scmp.eq.s32.totalorder %s13, 1
    %p94 = scmp.ne.s32.totalorder %s89, %s91
    %p95 = scmp.eq.s32.totalorder %s13, 0
    %p96 = por %p94, %p95
    %p97 = scmp.ne.s32.totalorder %s89, %s91
    %p98 = scmp.eq.s32.totalorder %s18, 1
    %p99 = por %p97, %p98
    %p100 = scmp.ne.s32.totalorder %s91, %s92
    %p101 = scmp.eq.s32.totalorder %s18, 0
    %p102 = por %p100, %p101
    %p103 = scmp.ne.s32.totalorder %s91, %s92
    %p104 = scmp.eq.s32.totalorder %s19, 1
    %p105 = por %p103, %p104
    %p107 = scmp.ne.s32.totalorder %s92, %s106
    %p108 = scmp.eq.s32.totalorder %s19, 0
    %p109 = por %p107, %p108
    %s111 = sadd.s32 %s110, 1
    %p114 = scmp.eq.s32.totalorder %s13, 1
    %p115 = scmp.ne.s32.totalorder %s110, %s112
    %p116 = scmp.eq.s32.totalorder %s13, 0
    %p117 = por %p115, %p116
    %p118 = scmp.ne.s32.totalorder %s110, %s112
    %p119 = scmp.eq.s32.totalorder %s18, 1
    %p120 = por %p118, %p119
    %p121 = scmp.ne.s32.totalorder %s112, %s113
    %p122 = scmp.eq.s32.totalorder %s18, 0
    %p123 = por %p121, %p122
    %p124 = scmp.ne.s32.totalorder %s112, %s113
    %p125 = scmp.eq.s32.totalorder %s19, 1
    %p126 = por %p124, %p125
    %p128 = scmp.ne.s32.totalorder %s113, %s127
    %p129 = scmp.eq.s32.totalorder %s19, 0
    %p130 = por %p128, %p129
    %s132 = sadd.s32 %s131, 1
    %p135 = scmp.eq.s32.totalorder %s13, 1
    %p136 = scmp.ne.s32.totalorder %s131, %s133
    %p137 = scmp.eq.s32.totalorder %s13, 0
    %p138 = por %p136, %p137
    %p139 = scmp.ne.s32.totalorder %s131, %s133
    %p140 = scmp.eq.s32.totalorder %s18, 1
    %p141 = por %p139, %p140
    %p142 = scmp.ne.s32.totalorder %s133, %s134
    %p143 = scmp.eq.s32.totalorder %s18, 0
    %p144 = por %p142, %p143
    %p145 = scmp.ne.s32.totalorder %s133, %s134
    %p146 = scmp.eq.s32.totalorder %s19, 1
    %p147 = por %p145, %p146
    %p149 = scmp.ne.s32.totalorder %s134, %s148
    %p150 = scmp.eq.s32.totalorder %s19, 0
    %p151 = por %p149, %p150
    %s153 = sadd.s32 %s152, 1
    %p156 = scmp.eq.s32.totalorder %s13, 1
    %p157 = scmp.ne.s32.totalorder %s152, %s154
    %p158 = scmp.eq.s32.totalorder %s13, 0
    %p159 = por %p157, %p158
    %p160 = scmp.ne.s32.totalorder %s152, %s154
    %p161 = scmp.eq.s32.totalorder %s18, 1
    %p162 = por %p160, %p161
    %p163 = scmp.ne.s32.totalorder %s154, %s155
    %p164 = scmp.eq.s32.totalorder %s18, 0
    %p165 = por %p163, %p164
    %p166 = scmp.ne.s32.totalorder %s154, %s155
    %p167 = scmp.eq.s32.totalorder %s19, 1
    %p168 = por %p166, %p167
    %p170 = scmp.ne.s32.totalorder %s155, %s169
    %p171 = scmp.eq.s32.totalorder %s19, 0
    %p172 = por %p170, %p171
    %s173 = ssub.s32 %s13, %s20
    %p174 = scmp.eq.s32.totalorder %s173, 0
    %s176 = sadd.s32 %s175, 1
    %s177 = scalar_select %p174, %s175, %s176
    %p180 = pneg %p174
    %p181 = scmp.eq.s32.totalorder %s13, 1
    %p182 = por %p180, %p181
    %p183 = scmp.ne.s32.totalorder %s175, %s178
    %p184 = scmp.eq.s32.totalorder %s13, 0
    %p185 = por %p183, %p184
    %p186 = scmp.ne.s32.totalorder %s175, %s178
    %p187 = scmp.eq.s32.totalorder %s18, 1
    %p188 = por %p186, %p187
    %p189 = scmp.ne.s32.totalorder %s178, %s179
    %p190 = scmp.eq.s32.totalorder %s18, 0
    %p191 = por %p189, %p190
    %p192 = scmp.ne.s32.totalorder %s178, %s179
    %p193 = scmp.eq.s32.totalorder %s19, 1
    %p194 = por %p192, %p193
    %p196 = scmp.ne.s32.totalorder %s179, %s195
    %p197 = scmp.eq.s32.totalorder %s19, 0
    %p198 = por %p196, %p197
    %p199 = scmp.le.s32.totalorder 1, %s13
    %p200 = scmp.lt.s32.totalorder %s13, 3
    %p201 = pnand %p199, %p200
    %p202 = pneg %p201
    // Predicated region
    $region9: #{tpu_custom_call.1} parent=5 // pred_check
      _
    $region10: #{tpu_custom_call.1} parent=5 // pred_check_branch
      %204 = sbr.rel (%p201) target = $region12
    $region11: #{tpu_custom_call.1} parent=5 // pred_region
      %s205 = ssub.s32 %s13, 1
      // Predicated region
      $region13: #{tpu_custom_call.1} parent=11 // pred_check
        %p206 = pneg %p60
      $region14: #{tpu_custom_call.1} parent=11 // pred_check_branch
        %208 = sbr.rel (%p206) target = $region16
      $region15: #{tpu_custom_call.1} parent=11 // pred_region
        _
      $region16: #{tpu_custom_call.1} parent=11 // pred_fallthru
        _
      // Predicated region
      $region17: #{tpu_custom_call.1} parent=11 // pred_check
        %p209 = pneg %p81
      $region18: #{tpu_custom_call.1} parent=11 // pred_check_branch
        %211 = sbr.rel (%p209) target = $region20
      $region19: #{tpu_custom_call.1} parent=11 // pred_region
        _
      $region20: #{tpu_custom_call.1} parent=11 // pred_fallthru
        _
      // Predicated region
      $region21: #{tpu_custom_call.1} parent=11 // pred_check
        %p212 = pneg %p102
      $region22: #{tpu_custom_call.1} parent=11 // pred_check_branch
        %214 = sbr.rel (%p212) target = $region24
      $region23: #{tpu_custom_call.1} parent=11 // pred_region
        _
      $region24: #{tpu_custom_call.1} parent=11 // pred_fallthru
        _
      // Predicated region
      $region25: #{tpu_custom_call.1} parent=11 // pred_check
        %p215 = pneg %p123
      $region26: #{tpu_custom_call.1} parent=11 // pred_check_branch
        %217 = sbr.rel (%p215) target = $region28
      $region27: #{tpu_custom_call.1} parent=11 // pred_region
        _
      $region28: #{tpu_custom_call.1} parent=11 // pred_fallthru
        _
      // Predicated region
      $region29: #{tpu_custom_call.1} parent=11 // pred_check
        %p218 = pneg %p144
      $region30: #{tpu_custom_call.1} parent=11 // pred_check_branch
        %220 = sbr.rel (%p218) target = $region32
      $region31: #{tpu_custom_call.1} parent=11 // pred_region
        _
      $region32: #{tpu_custom_call.1} parent=11 // pred_fallthru
        _
      // Predicated region
      $region33: #{tpu_custom_call.1} parent=11 // pred_check
        %p221 = pneg %p165
      $region34: #{tpu_custom_call.1} parent=11 // pred_check_branch
        %223 = sbr.rel (%p221) target = $region36
      $region35: #{tpu_custom_call.1} parent=11 // pred_region
        _
      $region36: #{tpu_custom_call.1} parent=11 // pred_fallthru
        _
    $region12: #{tpu_custom_call.1} parent=5 // pred_fallthru
      _
    %p224 = scmp.lt.s32.totalorder %s13, 2
    // Predicated region
    $region37: #{tpu_custom_call.1} parent=5 // pred_check
      %p225 = pneg %p224
    $region38: #{tpu_custom_call.1} parent=5 // pred_check_branch
      %227 = sbr.rel (%p225) target = $region40
    $region39: #{tpu_custom_call.1} parent=5 // pred_region
      // Predicated region
      $region41: #{tpu_custom_call.1} parent=39 // pred_check
        %p228 = pneg %p33
      $region42: #{tpu_custom_call.1} parent=39 // pred_check_branch
        %230 = sbr.rel (%p228) target = $region44
      $region43: #{tpu_custom_call.1} parent=39 // pred_region
        %s231 = smul.u32 16, %s13
        %p232 = scmp.lt.s32.totalorder %s231, 31
        %s233 = scalar_select %p232, %s231, 31
        %s234 = smul.addr %s233, 8
        %s235 = scalar_lea.vmem %s0, %s234
        %s236 = smul.u32 16, %s13
      $region44: #{tpu_custom_call.1} parent=39 // pred_fallthru
        _
    $region40: #{tpu_custom_call.1} parent=5 // pred_fallthru
      _
    %p237 = scmp.le.s32.totalorder 1, %s13
    %p238 = scmp.lt.s32.totalorder %s13, 3
    %p239 = pnand %p237, %p238
    %p240 = pneg %p239
    // Predicated region
    $region45: #{tpu_custom_call.1} parent=5 // pred_check
      _
    $region46: #{tpu_custom_call.1} parent=5 // pred_check_branch
      %242 = sbr.rel (%p239) target = $region48
    $region47: #{tpu_custom_call.1} parent=5 // pred_region
      %s243 = ssub.s32 %s13, 1
      %s244 = smul.u32 16, %s18
      %p245 = scmp.lt.s32.totalorder %s244, 31
      %s246 = scalar_select %p245, %s244, 31
      %s247 = smul.addr %s246, 8
      %s248 = scalar_lea.vmem %s0, %s247
      %p249 = pneg %p39
      %p250 = pneg %p36
      %p251 = pneg %p60
      %p252 = pneg %p57
      %p253 = pneg %p81
      %p254 = pneg %p78
      %p255 = pneg %p102
      %p256 = pneg %p99
      %p257 = pneg %p123
      %p258 = pneg %p120
      %p259 = pneg %p144
      %p260 = pneg %p141
      %p261 = pneg %p165
      %p262 = pneg %p162
      %p263 = pneg %p191
      %p264 = pneg %p188
      %s265 = smul.u32 16, %s18
      %p266 = scmp.lt.s32.totalorder %s265, 31
      %s267 = scalar_select %p266, %s265, 31
      %s268 = smul.addr %s267, 8
      %s269 = scalar_lea.vmem %s7, %s268
      %s270 = smul.u32 16, %s18
      %p271 = scmp.lt.s32.totalorder %s270, 31
      %s272 = scalar_select %p271, %s270, 31
      %s273 = smul.addr %s272, 8
      %s274 = scalar_lea.vmem %s0, %s273
      %s275 = smul.u32 16, %s18
      %s276 = smul.u32 16, %s18
      %p277 = scmp.lt.s32.totalorder %s276, 31
      %s278 = scalar_select %p277, %s276, 31
      %s279 = smul.addr %s278, 8
      %s280 = scalar_lea.vmem %s7, %s279
      %s281 = smul.u32 16, %s18
      %v283 = vld [vmem:[%s274] sm:$0xff]
      %v284 = vld [vmem:[%s274 + $0x8] sm:$0xff]
      %v285 = vld [vmem:[%s274 + $0x10] sm:$0xff]
      %v286 = vld [vmem:[%s274 + $0x18] sm:$0xff]
      %v287 = vld [vmem:[%s274 + $0x20] sm:$0xff]
      %v288 = vld [vmem:[%s274 + $0x28] sm:$0xff]
      %v289 = vld [vmem:[%s274 + $0x30] sm:$0xff]
      %v290 = vld [vmem:[%s274 + $0x38] sm:$0xff]
      %v291 = vld [vmem:[%s274 + $0x40] sm:$0xff]
      %v292 = vld [vmem:[%s274 + $0x48] sm:$0xff]
      %v293 = vld [vmem:[%s274 + $0x50] sm:$0xff]
      %v294 = vld [vmem:[%s274 + $0x58] sm:$0xff]
      %v295 = vld [vmem:[%s274 + $0x60] sm:$0xff]
      %v296 = vld [vmem:[%s274 + $0x68] sm:$0xff]
      %v297 = vld [vmem:[%s274 + $0x70] sm:$0xff]
      %v298 = vld [vmem:[%s274 + $0x78] sm:$0xff]
      %v299 = vpack.c.bf16 %v284, %v283
      %v300 = vpack.c.bf16 %v286, %v285
      %v301 = vpack.c.bf16 %v288, %v287
      %v302 = vpack.c.bf16 %v290, %v289
      %v303 = vpack.c.bf16 %v292, %v291
      %v304 = vpack.c.bf16 %v294, %v293
      %v305 = vpack.c.bf16 %v296, %v295
      %v306 = vpack.c.bf16 %v298, %v297
      %v307 = vld [vmem:[%s1] sm:$0x3]
      %v308 = vld [vmem:[%s2] sm:$0x1]
      %v310 = vlaneseq
      %v311 = vshrl.u32 %v310, 7
      %v312 = vsub.s32 0, %v311
      %v313 = vrot.slane %v308, %v312
      %vm315 = vcmask 31744
      %v317 = vsel %vm315, %v299, 0
      %v320 = vsel %vm315, %v300, 0
      %v323 = vsel %vm315, %v301, 0
      %v326 = vsel %vm315, %v302, 0
      %v329 = vsel %vm315, %v303, 0
      %v332 = vsel %vm315, %v304, 0
      %v335 = vsel %vm315, %v305, 0
      %v338 = vsel %vm315, %v306, 0
      %vm340 = vcmask 1041408
      %v342 = vsel %vm340, %v307, 0
      %344 = vmatprep.subr.bf16.mxu0 0
      %345 = vmatpush1.bf16.msra.mxu0 %v342
      %346 = vmatprep.subr.bf16.mxu0 0
      %347 = vmatpush1.bf16.msra.mxu0 0
      %348 = vmatprep.subr.bf16.mxu0 0
      %349 = vmatpush1.bf16.msra.mxu0 0
      %350 = vmatprep.subr.bf16.mxu0 0
      %351 = vmatpush1.bf16.msra.mxu0 0
      %352 = vmatprep.subr.bf16.mxu0 0
      %353 = vmatpush1.bf16.msra.mxu0 0
      %354 = vmatprep.subr.bf16.mxu0 0
      %355 = vmatpush1.bf16.msra.mxu0 0
      %356 = vmatprep.subr.bf16.mxu0 0
      %357 = vmatpush1.bf16.msra.mxu0 0
      %358 = vmatprep.subr.bf16.mxu0 0
      %359 = vmatpush1.bf16.msra.mxu0 0
      %360 = vmatprep.subr.bf16.mxu0 0
      %361 = vmatpush1.bf16.msra.mxu0 0
      %362 = vmatprep.subr.bf16.mxu0 0
      %363 = vmatpush1.bf16.msra.mxu0 0
      %364 = vmatprep.subr.bf16.mxu0 0
      %365 = vmatpush1.bf16.msra.mxu0 0
      %366 = vmatprep.subr.bf16.mxu0 0
      %367 = vmatpush1.bf16.msra.mxu0 0
      %368 = vmatprep.subr.bf16.mxu0 0
      %369 = vmatpush1.bf16.msra.mxu0 0
      %370 = vmatprep.subr.bf16.mxu0 0
      %371 = vmatpush1.bf16.msra.mxu0 0
      %372 = vmatprep.subr.bf16.mxu0 0
      %373 = vmatpush1.bf16.msra.mxu0 0
      %374 = vmatprep.subr.bf16.mxu0 0
      %375 = vmatpush1.bf16.msra.mxu0 0
      %376 = vmatprep.mubr.bf16.mxu0 0
      %377 = vmatmul.mubr.bf16.gmra.mrb[0].mxu0 %v317
      %v378 = vpop.f32.mrb[0].mxu0
      %v379 = vadd.f32 %v313, %v378
      %v380 = vpop.f32.mrb[0].mxu0
      %v381 = vpop.f32.mrb[0].mxu0
      %v382 = vadd.f32 %v313, %v381
      %v383 = vpop.f32.mrb[0].mxu0
      %384 = vmatprep.mubr.bf16.mxu0 0
      %385 = vmatmul.mubr.bf16.gmra.mrb[0].mxu0 %v320
      %v386 = vpop.f32.mrb[0].mxu0
      %v387 = vadd.f32 %v313, %v386
      %v388 = vpop.f32.mrb[0].mxu0
      %v389 = vpop.f32.mrb[0].mxu0
      %v390 = vadd.f32 %v313, %v389
      %v391 = vpop.f32.mrb[0].mxu0
      %392 = vmatprep.mubr.bf16.mxu0 0
      %393 = vmatmul.mubr.bf16.gmra.mrb[0].mxu0 %v323
      %v394 = vpop.f32.mrb[0].mxu0
      %v395 = vadd.f32 %v313, %v394
      %v396 = vpop.f32.mrb[0].mxu0
      %v397 = vpop.f32.mrb[0].mxu0
      %v398 = vadd.f32 %v313, %v397
      %v399 = vpop.f32.mrb[0].mxu0
      %400 = vmatprep.mubr.bf16.mxu0 0
      %401 = vmatmul.mubr.bf16.gmra.mrb[0].mxu0 %v326
      %v402 = vpop.f32.mrb[0].mxu0
      %v403 = vadd.f32 %v313, %v402
      %v404 = vpop.f32.mrb[0].mxu0
      %v405 = vpop.f32.mrb[0].mxu0
      %v406 = vadd.f32 %v313, %v405
      %v407 = vpop.f32.mrb[0].mxu0
      %408 = vmatprep.mubr.bf16.mxu0 0
      %409 = vmatmul.mubr.bf16.gmra.mrb[0].mxu0 %v329
      %v410 = vpop.f32.mrb[0].mxu0
      %v411 = vadd.f32 %v313, %v410
      %v412 = vpop.f32.mrb[0].mxu0
      %v413 = vpop.f32.mrb[0].mxu0
      %v414 = vadd.f32 %v313, %v413
      %v415 = vpop.f32.mrb[0].mxu0
      %416 = vmatprep.mubr.bf16.mxu0 0
      %417 = vmatmul.mubr.bf16.gmra.mrb[0].mxu0 %v332
      %v418 = vpop.f32.mrb[0].mxu0
      %v419 = vadd.f32 %v313, %v418
      %v420 = vpop.f32.mrb[0].mxu0
      %v421 = vpop.f32.mrb[0].mxu0
      %v422 = vadd.f32 %v313, %v421
      %v423 = vpop.f32.mrb[0].mxu0
      %424 = vmatprep.mubr.bf16.mxu0 0
      %425 = vmatmul.mubr.bf16.gmra.mrb[0].mxu0 %v335
      %v426 = vpop.f32.mrb[0].mxu0
      %v427 = vadd.f32 %v313, %v426
      %v428 = vpop.f32.mrb[0].mxu0
      %v429 = vpop.f32.mrb[0].mxu0
      %v430 = vadd.f32 %v313, %v429
      %v431 = vpop.f32.mrb[0].mxu0
      %432 = vmatprep.mubr.bf16.mxu0 0
      %433 = vmatmul.mubr.bf16.gmra.mrb[0].mxu0 %v338
      %v434 = vpop.f32.mrb[0].mxu0
      %v435 = vadd.f32 %v313, %v434
      %v436 = vpop.f32.mrb[0].mxu0
      %v437 = vpop.f32.mrb[0].mxu0
      %v438 = vadd.f32 %v313, %v437
      %v439 = vpop.f32.mrb[0].mxu0
      %440 = vdwg.mxu0
      %v441 = vtanh.pop %v379
      %v442 = vtanh.pop %v382
      %v443 = vtanh.pop %v387
      %v444 = vtanh.pop %v390
      %v445 = vtanh.pop %v395
      %v446 = vtanh.pop %v398
      %v447 = vtanh.pop %v403
      %v448 = vtanh.pop %v406
      %v449 = vtanh.pop %v411
      %v450 = vtanh.pop %v414
      %v451 = vtanh.pop %v419
      %v452 = vtanh.pop %v422
      %v453 = vtanh.pop %v427
      %v454 = vtanh.pop %v430
      %v455 = vtanh.pop %v435
      %v456 = vtanh.pop %v438
      %v457 = vpack.c.bf16 %v442, %v441
      %v458 = vpack.c.bf16 %v444, %v443
      %v459 = vpack.c.bf16 %v446, %v445
      %v460 = vpack.c.bf16 %v448, %v447
      %v461 = vpack.c.bf16 %v450, %v449
      %v462 = vpack.c.bf16 %v452, %v451
      %v463 = vpack.c.bf16 %v454, %v453
      %v464 = vpack.c.bf16 %v456, %v455
      %v465 = vld [vmem:[%s3] sm:$0xf]
      %v466 = vld [vmem:[%s3 + $0x4] sm:$0xf]
      %v467 = vld [vmem:[%s3 + $0x8] sm:$0xf]
      %v468 = vld [vmem:[%s3 + $0xc] sm:$0xf]
      %v469 = vld [vmem:[%s3 + $0x10] sm:$0xf]
      %v470 = vld [vmem:[%s3 + $0x14] sm:$0xf]
      %v471 = vld [vmem:[%s3 + $0x18] sm:$0xf]
      %v472 = vld [vmem:[%s3 + $0x1c] sm:$0xf]
      %v473 = vld [vmem:[%s3 + $0x20] sm:$0xf]
      %v474 = vld [vmem:[%s3 + $0x24] sm:$0xf]
      %v475 = vld [vmem:[%s3 + $0x28] sm:$0xf]
      %v476 = vld [vmem:[%s3 + $0x2c] sm:$0xf]
      %v477 = vld [vmem:[%s3 + $0x30] sm:$0xf]
      %v478 = vld [vmem:[%s3 + $0x34] sm:$0xf]
      %v479 = vld [vmem:[%s3 + $0x38] sm:$0xf]
      %v480 = vld [vmem:[%s3 + $0x3c] sm:$0xf]
      %v481 = vld [vmem:[%s4] sm:$0x1]
      %v483 = vlaneseq
      %v484 = vshrl.u32 %v483, 7
      %v485 = vsub.s32 0, %v484
      %v486 = vrot.slane %v481, %v485
      %v504 = vunpack.c.l.b16 %v465
      %v505 = vunpack.c.l.b16 %v466
      %v506 = vunpack.c.l.b16 %v467
      %v507 = vunpack.c.l.b16 %v468
      %v508 = vunpack.c.l.b16 %v469
      %v509 = vunpack.c.l.b16 %v470
      %v510 = vunpack.c.l.b16 %v471
      %v511 = vunpack.c.l.b16 %v472
      %v512 = vunpack.c.l.b16 %v473
      %v513 = vunpack.c.l.b16 %v474
      %v514 = vunpack.c.l.b16 %v475
      %v515 = vunpack.c.l.b16 %v476
      %v516 = vunpack.c.l.b16 %v477
      %v517 = vunpack.c.l.b16 %v478
      %v518 = vunpack.c.l.b16 %v479
      %v519 = vunpack.c.l.b16 %v480
      %v520 = vpack.c.b16 %v505, %v504
      %v521 = vpack.c.b16 %v507, %v506
      %v522 = vpack.c.b16 %v509, %v508
      %v523 = vpack.c.b16 %v511, %v510
      %v524 = vpack.c.b16 %v513, %v512
      %v525 = vpack.c.b16 %v515, %v514
      %v526 = vpack.c.b16 %v517, %v516
      %v527 = vpack.c.b16 %v519, %v518
      %536 = vmatprep.subr.bf16.mxu0 0
      %537 = vmatpush1.bf16.msra.mxu0 %v520
      %538 = vmatprep.subr.bf16.mxu0 0
      %539 = vmatpush1.bf16.msra.mxu0 %v521
      %540 = vmatprep.subr.bf16.mxu0 0
      %541 = vmatpush1.bf16.msra.mxu0 %v522
      %542 = vmatprep.subr.bf16.mxu0 0
      %543 = vmatpush1.bf16.msra.mxu0 %v523
      %544 = vmatprep.subr.bf16.mxu0 0
      %545 = vmatpush1.bf16.msra.mxu0 %v524
      %546 = vmatprep.subr.bf16.mxu0 0
      %547 = vmatpush1.bf16.msra.mxu0 %v525
      %548 = vmatprep.subr.bf16.mxu0 0
      %549 = vmatpush1.bf16.msra.mxu0 %v526
      %550 = vmatprep.subr.bf16.mxu0 0
      %551 = vmatpush1.bf16.msra.mxu0 %v527
      %552 = vmatprep.subr.bf16.mxu0 0
      %553 = vmatpush1.bf16.msra.mxu0 0
      %554 = vmatprep.subr.bf16.mxu0 0
      %555 = vmatpush1.bf16.msra.mxu0 0
      %556 = vmatprep.subr.bf16.mxu0 0
      %557 = vmatpush1.bf16.msra.mxu0 0
      %558 = vmatprep.subr.bf16.mxu0 0
      %559 = vmatpush1.bf16.msra.mxu0 0
      %560 = vmatprep.subr.bf16.mxu0 0
      %561 = vmatpush1.bf16.msra.mxu0 0
      %562 = vmatprep.subr.bf16.mxu0 0
      %563 = vmatpush1.bf16.msra.mxu0 0
      %564 = vmatprep.subr.bf16.mxu0 0
      %565 = vmatpush1.bf16.msra.mxu0 0
      %566 = vmatprep.subr.bf16.mxu0 0
      %567 = vmatpush1.bf16.msra.mxu0 0
      %568 = vmatprep.mubr.bf16.mxu0 0
      %569 = vmatmul.mubr.bf16.gmra.mrb[0].mxu0 %v457
      %v570 = vpop.f32.mrb[0].mxu0
      %v571 = vadd.f32 %v486, %v570
      %v572 = vpop.f32.mrb[0].mxu0
      %v573 = vpop.f32.mrb[0].mxu0
      %v574 = vadd.f32 %v486, %v573
      %v575 = vpop.f32.mrb[0].mxu0
      %576 = vmatprep.mubr.bf16.mxu0 0
      %577 = vmatmul.mubr.bf16.gmra.mrb[0].mxu0 %v458
      %v578 = vpop.f32.mrb[0].mxu0
      %v579 = vadd.f32 %v486, %v578
      %v580 = vpop.f32.mrb[0].mxu0
      %v581 = vpop.f32.mrb[0].mxu0
      %v582 = vadd.f32 %v486, %v581
      %v583 = vpop.f32.mrb[0].mxu0
      %584 = vmatprep.mubr.bf16.mxu0 0
      %585 = vmatmul.mubr.bf16.gmra.mrb[0].mxu0 %v459
      %v586 = vpop.f32.mrb[0].mxu0
      %v587 = vadd.f32 %v486, %v586
      %v588 = vpop.f32.mrb[0].mxu0
      %v589 = vpop.f32.mrb[0].mxu0
      %v590 = vadd.f32 %v486, %v589
      %v591 = vpop.f32.mrb[0].mxu0
      %592 = vmatprep.mubr.bf16.mxu0 0
      %593 = vmatmul.mubr.bf16.gmra.mrb[0].mxu0 %v460
      %v594 = vpop.f32.mrb[0].mxu0
      %v595 = vadd.f32 %v486, %v594
      %v596 = vpop.f32.mrb[0].mxu0
      %v597 = vpop.f32.mrb[0].mxu0
      %v598 = vadd.f32 %v486, %v597
      %v599 = vpop.f32.mrb[0].mxu0
      %600 = vmatprep.mubr.bf16.mxu0 0
      %601 = vmatmul.mubr.bf16.gmra.mrb[0].mxu0 %v461
      %v602 = vpop.f32.mrb[0].mxu0
      %v603 = vadd.f32 %v486, %v602
      %v604 = vpop.f32.mrb[0].mxu0
      %v605 = vpop.f32.mrb[0].mxu0
      %v606 = vadd.f32 %v486, %v605
      %v607 = vpop.f32.mrb[0].mxu0
      %608 = vmatprep.mubr.bf16.mxu0 0
      %609 = vmatmul.mubr.bf16.gmra.mrb[0].mxu0 %v462
      %v610 = vpop.f32.mrb[0].mxu0
      %v611 = vadd.f32 %v486, %v610
      %v612 = vpop.f32.mrb[0].mxu0
      %v613 = vpop.f32.mrb[0].mxu0
      %v614 = vadd.f32 %v486, %v613
      %v615 = vpop.f32.mrb[0].mxu0
      %616 = vmatprep.mubr.bf16.mxu0 0
      %617 = vmatmul.mubr.bf16.gmra.mrb[0].mxu0 %v463
      %v618 = vpop.f32.mrb[0].mxu0
      %v619 = vadd.f32 %v486, %v618
      %v620 = vpop.f32.mrb[0].mxu0
      %v621 = vpop.f32.mrb[0].mxu0
      %v622 = vadd.f32 %v486, %v621
      %v623 = vpop.f32.mrb[0].mxu0
      %624 = vmatprep.mubr.bf16.mxu0 0
      %625 = vmatmul.mubr.bf16.gmra.mrb[0].mxu0 %v464
      %v626 = vpop.f32.mrb[0].mxu0
      %v627 = vadd.f32 %v486, %v626
      %v628 = vpop.f32.mrb[0].mxu0
      %v629 = vpop.f32.mrb[0].mxu0
      %v630 = vadd.f32 %v486, %v629
      %v631 = vpop.f32.mrb[0].mxu0
      %632 = vdwg.mxu0
      %v633 = vtanh.pop %v571
      %v634 = vtanh.pop %v574
      %v635 = vtanh.pop %v579
      %v636 = vtanh.pop %v582
      %v637 = vtanh.pop %v587
      %v638 = vtanh.pop %v590
      %v639 = vtanh.pop %v595
      %v640 = vtanh.pop %v598
      %v641 = vtanh.pop %v603
      %v642 = vtanh.pop %v606
      %v643 = vtanh.pop %v611
      %v644 = vtanh.pop %v614
      %v645 = vtanh.pop %v619
      %v646 = vtanh.pop %v622
      %v647 = vtanh.pop %v627
      %v648 = vtanh.pop %v630
      %v649 = vpack.c.bf16 %v634, %v633
      %v650 = vpack.c.bf16 %v636, %v635
      %v651 = vpack.c.bf16 %v638, %v637
      %v652 = vpack.c.bf16 %v640, %v639
      %v653 = vpack.c.bf16 %v642, %v641
      %v654 = vpack.c.bf16 %v644, %v643
      %v655 = vpack.c.bf16 %v646, %v645
      %v656 = vpack.c.bf16 %v648, %v647
      %v657 = vld [vmem:[%s5] sm:$0xf]
      %v658 = vld [vmem:[%s5 + $0x4] sm:$0xf]
      %v659 = vld [vmem:[%s5 + $0x8] sm:$0xf]
      %v660 = vld [vmem:[%s5 + $0xc] sm:$0xf]
      %v661 = vld [vmem:[%s5 + $0x10] sm:$0xf]
      %v662 = vld [vmem:[%s5 + $0x14] sm:$0xf]
      %v663 = vld [vmem:[%s5 + $0x18] sm:$0xf]
      %v664 = vld [vmem:[%s5 + $0x1c] sm:$0xf]
      %v665 = vld [vmem:[%s5 + $0x20] sm:$0xf]
      %v666 = vld [vmem:[%s5 + $0x24] sm:$0xf]
      %v667 = vld [vmem:[%s5 + $0x28] sm:$0xf]
      %v668 = vld [vmem:[%s5 + $0x2c] sm:$0xf]
      %v669 = vld [vmem:[%s5 + $0x30] sm:$0xf]
      %v670 = vld [vmem:[%s5 + $0x34] sm:$0xf]
      %v671 = vld [vmem:[%s5 + $0x38] sm:$0xf]
      %v672 = vld [vmem:[%s5 + $0x3c] sm:$0xf]
      %v673 = vld [vmem:[%s6] sm:$0x1]
      %v675 = vlaneseq
      %v676 = vshrl.u32 %v675, 7
      %v677 = vsub.s32 0, %v676
      %v678 = vrot.slane %v673, %v677
      %v696 = vunpack.c.l.b16 %v657
      %v697 = vunpack.c.l.b16 %v658
      %v698 = vunpack.c.l.b16 %v659
      %v699 = vunpack.c.l.b16 %v660
      %v700 = vunpack.c.l.b16 %v661
      %v701 = vunpack.c.l.b16 %v662
      %v702 = vunpack.c.l.b16 %v663
      %v703 = vunpack.c.l.b16 %v664
      %v704 = vunpack.c.l.b16 %v665
      %v705 = vunpack.c.l.b16 %v666
      %v706 = vunpack.c.l.b16 %v667
      %v707 = vunpack.c.l.b16 %v668
      %v708 = vunpack.c.l.b16 %v669
      %v709 = vunpack.c.l.b16 %v670
      %v710 = vunpack.c.l.b16 %v671
      %v711 = vunpack.c.l.b16 %v672
      %v712 = vpack.c.b16 %v697, %v696
      %v713 = vpack.c.b16 %v699, %v698
      %v714 = vpack.c.b16 %v701, %v700
      %v715 = vpack.c.b16 %v703, %v702
      %v716 = vpack.c.b16 %v705, %v704
      %v717 = vpack.c.b16 %v707, %v706
      %v718 = vpack.c.b16 %v709, %v708
      %v719 = vpack.c.b16 %v711, %v710
      %728 = vmatprep.subr.bf16.mxu0 0
      %729 = vmatpush1.bf16.msra.mxu0 %v712
      %730 = vmatprep.subr.bf16.mxu0 0
      %731 = vmatpush1.bf16.msra.mxu0 %v713
      %732 = vmatprep.subr.bf16.mxu0 0
      %733 = vmatpush1.bf16.msra.mxu0 %v714
      %734 = vmatprep.subr.bf16.mxu0 0
      %735 = vmatpush1.bf16.msra.mxu0 %v715
      %736 = vmatprep.subr.bf16.mxu0 0
      %737 = vmatpush1.bf16.msra.mxu0 %v716
      %738 = vmatprep.subr.bf16.mxu0 0
      %739 = vmatpush1.bf16.msra.mxu0 %v717
      %740 = vmatprep.subr.bf16.mxu0 0
      %741 = vmatpush1.bf16.msra.mxu0 %v718
      %742 = vmatprep.subr.bf16.mxu0 0
      %743 = vmatpush1.bf16.msra.mxu0 %v719
      %744 = vmatprep.subr.bf16.mxu0 0
      %745 = vmatpush1.bf16.msra.mxu0 0
      %746 = vmatprep.subr.bf16.mxu0 0
      %747 = vmatpush1.bf16.msra.mxu0 0
      %748 = vmatprep.subr.bf16.mxu0 0
      %749 = vmatpush1.bf16.msra.mxu0 0
      %750 = vmatprep.subr.bf16.mxu0 0
      %751 = vmatpush1.bf16.msra.mxu0 0
      %752 = vmatprep.subr.bf16.mxu0 0
      %753 = vmatpush1.bf16.msra.mxu0 0
      %754 = vmatprep.subr.bf16.mxu0 0
      %755 = vmatpush1.bf16.msra.mxu0 0
      %756 = vmatprep.subr.bf16.mxu0 0
      %757 = vmatpush1.bf16.msra.mxu0 0
      %758 = vmatprep.subr.bf16.mxu0 0
      %759 = vmatpush1.bf16.msra.mxu0 0
      %760 = vmatprep.mubr.bf16.mxu0 0
      %761 = vmatmul.mubr.bf16.gmra.mrb[0].mxu0 %v649
      %v762 = vpop.f32.mrb[0].mxu0
      %v763 = vadd.f32 %v678, %v762
      %v764 = vpop.f32.mrb[0].mxu0
      %v765 = vpop.f32.mrb[0].mxu0
      %v766 = vadd.f32 %v678, %v765
      %v767 = vpop.f32.mrb[0].mxu0
      %768 = vmatprep.mubr.bf16.mxu0 0
      %769 = vmatmul.mubr.bf16.gmra.mrb[0].mxu0 %v650
      %v770 = vpop.f32.mrb[0].mxu0
      %v771 = vadd.f32 %v678, %v770
      %v772 = vpop.f32.mrb[0].mxu0
      %v773 = vpop.f32.mrb[0].mxu0
      %v774 = vadd.f32 %v678, %v773
      %v775 = vpop.f32.mrb[0].mxu0
      %776 = vmatprep.mubr.bf16.mxu0 0
      %777 = vmatmul.mubr.bf16.gmra.mrb[0].mxu0 %v651
      %v778 = vpop.f32.mrb[0].mxu0
      %v779 = vadd.f32 %v678, %v778
      %v780 = vpop.f32.mrb[0].mxu0
      %v781 = vpop.f32.mrb[0].mxu0
      %v782 = vadd.f32 %v678, %v781
      %v783 = vpop.f32.mrb[0].mxu0
      %784 = vmatprep.mubr.bf16.mxu0 0
      %785 = vmatmul.mubr.bf16.gmra.mrb[0].mxu0 %v652
      %v786 = vpop.f32.mrb[0].mxu0
      %v787 = vadd.f32 %v678, %v786
      %v788 = vpop.f32.mrb[0].mxu0
      %v789 = vpop.f32.mrb[0].mxu0
      %v790 = vadd.f32 %v678, %v789
      %v791 = vpop.f32.mrb[0].mxu0
      %792 = vmatprep.mubr.bf16.mxu0 0
      %793 = vmatmul.mubr.bf16.gmra.mrb[0].mxu0 %v653
      %v794 = vpop.f32.mrb[0].mxu0
      %v795 = vadd.f32 %v678, %v794
      %v796 = vpop.f32.mrb[0].mxu0
      %v797 = vpop.f32.mrb[0].mxu0
      %v798 = vadd.f32 %v678, %v797
      %v799 = vpop.f32.mrb[0].mxu0
      %800 = vmatprep.mubr.bf16.mxu0 0
      %801 = vmatmul.mubr.bf16.gmra.mrb[0].mxu0 %v654
      %v802 = vpop.f32.mrb[0].mxu0
      %v803 = vadd.f32 %v678, %v802
      %v804 = vpop.f32.mrb[0].mxu0
      %v805 = vpop.f32.mrb[0].mxu0
      %v806 = vadd.f32 %v678, %v805
      %v807 = vpop.f32.mrb[0].mxu0
      %808 = vmatprep.mubr.bf16.mxu0 0
      %809 = vmatmul.mubr.bf16.gmra.mrb[0].mxu0 %v655
      %v810 = vpop.f32.mrb[0].mxu0
      %v811 = vadd.f32 %v678, %v810
      %v812 = vpop.f32.mrb[0].mxu0
      %v813 = vpop.f32.mrb[0].mxu0
      %v814 = vadd.f32 %v678, %v813
      %v815 = vpop.f32.mrb[0].mxu0
      %816 = vmatprep.mubr.bf16.mxu0 0
      %817 = vmatmul.mubr.bf16.gmra.mrb[0].mxu0 %v656
      %v818 = vpop.f32.mrb[0].mxu0
      %v819 = vadd.f32 %v678, %v818
      %v820 = vpop.f32.mrb[0].mxu0
      %v821 = vpop.f32.mrb[0].mxu0
      %v822 = vadd.f32 %v678, %v821
      %v823 = vpop.f32.mrb[0].mxu0
      %824 = vdwg.mxu0
      %vm825 = vcmask 15360
      %826 = vst.msk [vmem:[%s280] sm:$0xff] %vm825, %v763
      %827 = vst.msk [vmem:[%s280 + $0x8] sm:$0xff] %vm825, %v766
      %828 = vst.msk [vmem:[%s280 + $0x10] sm:$0xff] %vm825, %v771
      %829 = vst.msk [vmem:[%s280 + $0x18] sm:$0xff] %vm825, %v774
      %830 = vst.msk [vmem:[%s280 + $0x20] sm:$0xff] %vm825, %v779
      %831 = vst.msk [vmem:[%s280 + $0x28] sm:$0xff] %vm825, %v782
      %832 = vst.msk [vmem:[%s280 + $0x30] sm:$0xff] %vm825, %v787
      %833 = vst.msk [vmem:[%s280 + $0x38] sm:$0xff] %vm825, %v790
      %834 = vst.msk [vmem:[%s280 + $0x40] sm:$0xff] %vm825, %v795
      %835 = vst.msk [vmem:[%s280 + $0x48] sm:$0xff] %vm825, %v798
      %836 = vst.msk [vmem:[%s280 + $0x50] sm:$0xff] %vm825, %v803
      %837 = vst.msk [vmem:[%s280 + $0x58] sm:$0xff] %vm825, %v806
      %838 = vst.msk [vmem:[%s280 + $0x60] sm:$0xff] %vm825, %v811
      %839 = vst.msk [vmem:[%s280 + $0x68] sm:$0xff] %vm825, %v814
      %840 = vst.msk [vmem:[%s280 + $0x70] sm:$0xff] %vm825, %v819
      %841 = vst.msk [vmem:[%s280 + $0x78] sm:$0xff] %vm825, %v822
      %s842 = smul.u32 16, %s18
      %p843 = scmp.lt.s32.totalorder %s842, 31
      %s844 = scalar_select %p843, %s842, 31
      %s845 = smul.addr %s844, 8
      %s846 = scalar_lea.vmem %s7, %s845
      // Predicated region
      $region49: #{tpu_custom_call.1} parent=47 // pred_check
        %p847 = pneg %p188
      $region50: #{tpu_custom_call.1} parent=47 // pred_check_branch
        %849 = sbr.rel (%p847) target = $region52
      $region51: #{tpu_custom_call.1} parent=47 // pred_region
        %s850 = smul.u32 16, %s18
      $region52: #{tpu_custom_call.1} parent=47 // pred_fallthru
        _
    $region48: #{tpu_custom_call.1} parent=5 // pred_fallthru
      _
    %p851 = scmp.le.s32.totalorder 2, %s13
    // Predicated region
    $region53: #{tpu_custom_call.1} parent=5 // pred_check
      %p852 = pneg %p851
    $region54: #{tpu_custom_call.1} parent=5 // pred_check_branch
      %854 = sbr.rel (%p852) target = $region56
    $region55: #{tpu_custom_call.1} parent=5 // pred_region
      %s855 = ssub.s32 %s13, 2
      // Predicated region
      $region57: #{tpu_custom_call.1} parent=55 // pred_check
        %p856 = pneg %p194
      $region58: #{tpu_custom_call.1} parent=55 // pred_check_branch
        %858 = sbr.rel (%p856) target = $region60
      $region59: #{tpu_custom_call.1} parent=55 // pred_region
        %s859 = smul.u32 16, %s19
        %p860 = scmp.lt.s32.totalorder %s859, 31
        %s861 = scalar_select %p860, %s859, 31
        %s862 = smul.addr %s861, 8
        %s863 = scalar_lea.vmem %s7, %s862
      $region60: #{tpu_custom_call.1} parent=55 // pred_fallthru
        _
    $region56: #{tpu_custom_call.1} parent=5 // pred_fallthru
      _
  $region6: #{tpu_custom_call.1} parent=0 // loop_footer
    %s17 = sadd.s32 1, %s13
  $region7: #{tpu_custom_call.1} parent=0 // loop_footer_branch
    %12 = sbr.rel target = $region3
  $region8: #{tpu_custom_call.1} parent=0 // loop_exit
    _

</llo_original>
